<compile_context>
chip_gen: v7x
topology: tpu7x:2x2x1
jax: 0.10.0
libtpu: 0.0.40
codegen_flags: <defaults>
</compile_context>

<pallas_src>
from functools import partial

import jax
import jax.numpy as jnp
from jax import lax
from jax.experimental import pallas as pl
from jax.experimental.pallas import tpu as pltpu

EPS = 1e-5
LANE = 128  # lane-dense output width / packed-vector width


def _disc_kernel(x_ref, w1_ref, w2_ref, w3_ref, vec_ref, o_ref):
    """Whole MLP forward for one problem: 3 matmuls + 2 fused batchnorm+ReLU blocks.

    x_ref:  (1, B, L)      input block (leading problem dim of size 1)
    w1_ref: (L, H)         Linear1 weight (pre-transposed)
    w2_ref: (H, H)         Linear2 weight (pre-transposed)
    w3_ref: (H, 128)       Linear3 weight, zero-padded to 128 output lanes
    vec_ref:(8, 128)       packed rows: [g1, be1, g2, be2, b3(pad), 0, 0, 0]
    o_ref:  (1, B, 128)    lane-dense output slab
    """
    H = w1_ref.shape[1]
    B = x_ref.shape[1]
    inv_b = 1.0 / B  # trace-time Python constant

    x = x_ref[0]

    g1 = vec_ref[0:1, :H]
    be1 = vec_ref[1:2, :H]
    g2 = vec_ref[2:3, :H]
    be2 = vec_ref[3:4, :H]
    b3 = vec_ref[4:5, :]        # full 128 lanes (zero beyond out_dims)

    # ---- Linear 1 (bias cancelled by batch-stat BN) + BN + ReLU ----
    h = jnp.dot(x, w1_ref[...], preferred_element_type=jnp.float32)
    s = jnp.sum(jnp.concatenate([h, h * h], axis=-1), axis=0, keepdims=True) * inv_b
    mu, ex2 = s[:, :H], s[:, H:]
    var = jnp.maximum(ex2 - mu * mu, 0.0)
    scale = g1 * lax.rsqrt(var + EPS)           # EUP rsqrt
    shift = be1 - mu * scale
    h = jnp.maximum(h * scale + shift, 0.0)

    # ---- Linear 2 (bias cancelled by batch-stat BN) + BN + ReLU ----
    h = jnp.dot(h, w2_ref[...], preferred_element_type=jnp.float32)
    s = jnp.sum(jnp.concatenate([h, h * h], axis=-1), axis=0, keepdims=True) * inv_b
    mu, ex2 = s[:, :H], s[:, H:]
    var = jnp.maximum(ex2 - mu * mu, 0.0)
    scale = g2 * lax.rsqrt(var + EPS)
    shift = be2 - mu * scale
    h = jnp.maximum(h * scale + shift, 0.0)

    # ---- Linear 3 (output head, no final activation), lane-dense store ----
    o_ref[0] = (jnp.dot(h, w3_ref[...], preferred_element_type=jnp.float32)
                + b3).astype(o_ref.dtype)


def _cost_estimate(P, B, L, H):
    flops = 2 * P * B * (L * H + H * H + H * LANE)
    bytes_accessed = 4 * (P * B * L + L * H + H * H + H * LANE + 8 * LANE
                          + P * B * LANE)
    return pl.CostEstimate(flops=flops,
                           transcendentals=2 * P * H,
                           bytes_accessed=bytes_accessed)


@partial(jax.jit, static_argnames=("out_dims",))
def discriminator_forward(x, w1, w2, w3p, vec, *, out_dims):
    """Single problem. x: (B, L) f32 -> (B, out_dims) f32. No grid (one VMEM block)."""
    B, L = x.shape
    H = w1.shape[1]
    vmem = pl.BlockSpec(memory_space=pltpu.MemorySpace.VMEM)
    out = pl.pallas_call(
        _disc_kernel,
        out_shape=jax.ShapeDtypeStruct((1, B, LANE), jnp.float32),
        in_specs=[vmem] * 5,
        out_specs=vmem,
        cost_estimate=_cost_estimate(1, B, L, H),
    )(x.reshape(1, B, L), w1, w2, w3p, vec)
    return out[0, :, :out_dims]


@partial(jax.jit, static_argnames=("out_dims",))
def discriminator_forward_many(xs, w1, w2, w3p, vec, *, out_dims):
    """P independent problems in one launch. xs: (P, B, L) -> (P, B, out_dims).

    One grid step per problem; BN statistics are computed per-problem batch, so
    the math is identical to P separate forward passes. Params are re-used
    (constant block index) across grid steps; "parallel" lets megacore shard P.
    """
    P, B, L = xs.shape
    H = w1.shape[1]
    grid_spec = pltpu.PrefetchScalarGridSpec(
        num_scalar_prefetch=0,
        grid=(P,),
        in_specs=[
            pl.BlockSpec((1, B, L), lambda p: (p, 0, 0)),
            pl.BlockSpec((L, H), lambda p: (0, 0)),
            pl.BlockSpec((H, H), lambda p: (0, 0)),
            pl.BlockSpec((H, LANE), lambda p: (0, 0)),
            pl.BlockSpec((8, LANE), lambda p: (0, 0)),
        ],
        out_specs=pl.BlockSpec((1, B, LANE), lambda p: (p, 0, 0)),
    )
    out = pl.pallas_call(
        _disc_kernel,
        out_shape=jax.ShapeDtypeStruct((P, B, LANE), jnp.float32),
        grid_spec=grid_spec,
        compiler_params=pltpu.CompilerParams(dimension_semantics=("parallel",)),
        cost_estimate=_cost_estimate(P, B, L, H),
    )(xs, w1, w2, w3p, vec)
    return out[:, :, :out_dims]


def pack_params(p):
    """Pack kernel-side parameters:
       - w3 zero-padded to (H, 128) for a lane-dense output store,
       - the five per-feature vectors packed into one (8, 128) buffer."""
    H = p["w1"].shape[1]
    out_dims = p["w3"].shape[1]
    w3p = jnp.zeros((H, LANE), jnp.float32).at[:, :out_dims].set(p["w3"])
    vec = jnp.zeros((8, LANE), jnp.float32)
    vec = vec.at[0, :H].set(p["g1"][0])
    vec = vec.at[1, :H].set(p["be1"][0])
    vec = vec.at[2, :H].set(p["g2"][0])
    vec = vec.at[3, :H].set(p["be2"][0])
    vec = vec.at[4, :out_dims].set(p["b3"][0])
    return p["w1"], p["w2"], w3p, vec, out_dims


def init_params(key, *, latent_size, hidden_size, domain_dims):
    """Deterministic synthetic parameters with the same shapes PyTorch would build.

    Linear weights are stored (in_features, out_features) = W_pytorch.T.
    BatchNorm affine params (gamma, beta) are stored as (1, features).
    b1/b2 are generated (to mirror the PyTorch module and feed the reference),
    but the kernel does not consume them (cancelled by batch-stat BN).
    """
    out_dims = domain_dims * 2
    ks = jax.random.split(key, 8)

    def lin(kw, kb, fan_in, fan_out):
        bound = 1.0 / jnp.sqrt(fan_in)
        w = jax.random.uniform(kw, (fan_in, fan_out), jnp.float32, -bound, bound)
        b = jax.random.uniform(kb, (1, fan_out), jnp.float32, -bound, bound)
        return w, b

    w1, b1 = lin(ks[0], ks[1], latent_size, hidden_size)
    w2, b2 = lin(ks[2], ks[3], hidden_size, hidden_size)
    w3, b3 = lin(ks[4], ks[5], hidden_size, out_dims)

    # PyTorch default BatchNorm1d init: gamma=1, beta=0 (gamma perturbed slightly
    # so the affine transform is exercised).
    g1 = jnp.ones((1, hidden_size), jnp.float32) + 0.1 * jax.random.normal(
        ks[6], (1, hidden_size), jnp.float32)
    be1 = jnp.zeros((1, hidden_size), jnp.float32)
    g2 = jnp.ones((1, hidden_size), jnp.float32) + 0.1 * jax.random.normal(
        ks[7], (1, hidden_size), jnp.float32)
    be2 = jnp.zeros((1, hidden_size), jnp.float32)

    return dict(w1=w1, b1=b1, g1=g1, be1=be1,
                w2=w2, b2=b2, g2=g2, be2=be2,
                w3=w3, b3=b3)


def _reference_forward(x, p):
    """Pure-JAX reference mirroring the PyTorch module (biases included)."""
    h = x @ p["w1"] + p["b1"]
    mu = h.mean(0, keepdims=True)
    var = ((h - mu) ** 2).mean(0, keepdims=True)
    h = jnp.maximum((h - mu) / jnp.sqrt(var + EPS) * p["g1"] + p["be1"], 0.0)
    h = h @ p["w2"] + p["b2"]
    mu = h.mean(0, keepdims=True)
    var = ((h - mu) ** 2).mean(0, keepdims=True)
    h = jnp.maximum((h - mu) / jnp.sqrt(var + EPS) * p["g2"] + p["be2"], 0.0)
    return h @ p["w3"] + p["b3"]


if __name__ == "__main__":
    # Hyperparameters consistent with Discriminator.__init__
    batch = 8
    latent_size = 16
    hidden_size = 32
    domain_dims = 2   # output dims = domain_dims * 2 = 4
    num_problems = 4  # independent problems amortized over one pallas_call
    # depth = 3, dropout = 0.0, activation = ReLU, use_batchnorm = True

    key = jax.random.PRNGKey(0)
    kx, kxs, kp = jax.random.split(key, 3)
    x = jax.random.normal(kx, (batch, latent_size), jnp.float32)
    xs = jax.random.normal(kxs, (num_problems, batch, latent_size), jnp.float32)
    params = init_params(kp, latent_size=latent_size,
                         hidden_size=hidden_size, domain_dims=domain_dims)
    w1, w2, w3p, vec, out_dims = pack_params(params)

    # Single-problem path (no grid).
    out = discriminator_forward(x, w1, w2, w3p, vec, out_dims=out_dims)
    out = jax.block_until_ready(out)
    ref = _reference_forward(x, params)
    assert out.shape == (batch, out_dims), out.shape
    assert jnp.allclose(out, ref, atol=1e-4, rtol=1e-4), "single-problem mismatch"

    # Amortized multi-problem path (one launch, leading parallel grid axis).
    out_many = discriminator_forward_many(xs, w1, w2, w3p, vec, out_dims=out_dims)
    out_many = jax.block_until_ready(out_many)
    ref_many = jax.vmap(lambda xi: _reference_forward(xi, params))(xs)
    assert out_many.shape == (num_problems, batch, out_dims), out_many.shape
    assert jnp.allclose(out_many, ref_many, atol=1e-4, rtol=1e-4), "multi-problem mismatch"

    print("KERNEL_OK")
</pallas_src>

<mosaic_0001>
module attributes {stable_mosaic.version = 11 : i64} {
  func.func @_disc_kernel(%arg0: memref<1x8x16xf32, #tpu.memory_space<vmem>>, %arg1: memref<16x32xf32, #tpu.memory_space<vmem>>, %arg2: memref<32x32xf32, #tpu.memory_space<vmem>>, %arg3: memref<32x128xf32, #tpu.memory_space<vmem>>, %arg4: memref<8x128xf32, #tpu.memory_space<vmem>>, %arg5: memref<1x8x128xf32, #tpu.memory_space<vmem>>) attributes {dimension_semantics = [], scalar_prefetch = 0 : i64, scratch_operands = 0 : i64, tpu.core_type = #tpu.core_type<tc>} {
    %c0 = arith.constant 0 : index
    %c0_0 = arith.constant 0 : index
    %c0_1 = arith.constant 0 : index
    %0 = vector.load %arg0[%c0, %c0_0, %c0_1] : memref<1x8x16xf32, #tpu.memory_space<vmem>>, vector<1x8x16xf32>
    %1 = vector.shape_cast %0 : vector<1x8x16xf32> to vector<8x16xf32>
    %c0_2 = arith.constant 0 : index
    %c0_3 = arith.constant 0 : index
    %2 = vector.load %arg4[%c0_2, %c0_3] : memref<8x128xf32, #tpu.memory_space<vmem>>, vector<1x32xf32>
    %c1 = arith.constant 1 : index
    %c0_4 = arith.constant 0 : index
    %3 = vector.load %arg4[%c1, %c0_4] : memref<8x128xf32, #tpu.memory_space<vmem>>, vector<1x32xf32>
    %c2 = arith.constant 2 : index
    %c0_5 = arith.constant 0 : index
    %4 = vector.load %arg4[%c2, %c0_5] : memref<8x128xf32, #tpu.memory_space<vmem>>, vector<1x32xf32>
    %c3 = arith.constant 3 : index
    %c0_6 = arith.constant 0 : index
    %5 = vector.load %arg4[%c3, %c0_6] : memref<8x128xf32, #tpu.memory_space<vmem>>, vector<1x32xf32>
    %c4 = arith.constant 4 : index
    %c0_7 = arith.constant 0 : index
    %6 = vector.load %arg4[%c4, %c0_7] : memref<8x128xf32, #tpu.memory_space<vmem>>, vector<1x128xf32>
    %c0_8 = arith.constant 0 : index
    %c0_9 = arith.constant 0 : index
    %7 = vector.load %arg1[%c0_8, %c0_9] : memref<16x32xf32, #tpu.memory_space<vmem>>, vector<16x32xf32>
    %cst = arith.constant dense<0.000000e+00> : vector<8x32xf32>
    %8 = tpu.matmul %1, %7, %cst {dimension_numbers = #tpu.dot_dimension_numbers<[1], [0], [0], [1], [0, 0, 1, 1], [], []>} : vector<8x16xf32>, vector<16x32xf32>, vector<8x32xf32> -> vector<8x32xf32>
    %9 = arith.mulf %8, %8 : vector<8x32xf32>
    %10 = tpu.concatenate %8, %9 in 1 : vector<8x32xf32>, vector<8x32xf32> -> vector<8x64xf32>
    %cst_10 = arith.constant dense<0.000000e+00> : vector<64xf32>
    %11 = vector.multi_reduction <add>, %10, %cst_10 [0] : vector<8x64xf32> to vector<64xf32>
    %12 = vector.shape_cast %11 : vector<64xf32> to vector<1x64xf32>
    %cst_11 = arith.constant 1.250000e-01 : f32
    %13 = vector.broadcast %cst_11 : f32 to vector<1x64xf32>
    %14 = arith.mulf %12, %13 : vector<1x64xf32>
    %15 = vector.extract_strided_slice %14 {offsets = [0, 0], sizes = [1, 32], strides = [1, 1]} : vector<1x64xf32> to vector<1x32xf32>
    %16 = vector.extract_strided_slice %14 {offsets = [0, 32], sizes = [1, 32], strides = [1, 1]} : vector<1x64xf32> to vector<1x32xf32>
    %17 = arith.mulf %15, %15 : vector<1x32xf32>
    %18 = arith.subf %16, %17 : vector<1x32xf32>
    %cst_12 = arith.constant 0.000000e+00 : f32
    %19 = vector.broadcast %cst_12 : f32 to vector<1x32xf32>
    %20 = arith.maximumf %18, %19 : vector<1x32xf32>
    %cst_13 = arith.constant 9.99999974E-6 : f32
    %21 = vector.broadcast %cst_13 : f32 to vector<1x32xf32>
    %22 = arith.addf %20, %21 : vector<1x32xf32>
    %23 = math.rsqrt %22 : vector<1x32xf32>
    %24 = arith.mulf %2, %23 : vector<1x32xf32>
    %25 = arith.mulf %15, %24 : vector<1x32xf32>
    %26 = arith.subf %3, %25 : vector<1x32xf32>
    %27 = vector.broadcast %24 : vector<1x32xf32> to vector<8x32xf32>
    %28 = arith.mulf %8, %27 : vector<8x32xf32>
    %29 = vector.broadcast %26 : vector<1x32xf32> to vector<8x32xf32>
    %30 = arith.addf %28, %29 : vector<8x32xf32>
    %cst_14 = arith.constant 0.000000e+00 : f32
    %31 = vector.broadcast %cst_14 : f32 to vector<8x32xf32>
    %32 = arith.maximumf %30, %31 : vector<8x32xf32>
    %c0_15 = arith.constant 0 : index
    %c0_16 = arith.constant 0 : index
    %33 = vector.load %arg2[%c0_15, %c0_16] : memref<32x32xf32, #tpu.memory_space<vmem>>, vector<32x32xf32>
    %cst_17 = arith.constant dense<0.000000e+00> : vector<8x32xf32>
    %34 = tpu.matmul %32, %33, %cst_17 {dimension_numbers = #tpu.dot_dimension_numbers<[1], [0], [0], [1], [0, 0, 1, 1], [], []>} : vector<8x32xf32>, vector<32x32xf32>, vector<8x32xf32> -> vector<8x32xf32>
    %35 = arith.mulf %34, %34 : vector<8x32xf32>
    %36 = tpu.concatenate %34, %35 in 1 : vector<8x32xf32>, vector<8x32xf32> -> vector<8x64xf32>
    %cst_18 = arith.constant dense<0.000000e+00> : vector<64xf32>
    %37 = vector.multi_reduction <add>, %36, %cst_18 [0] : vector<8x64xf32> to vector<64xf32>
    %38 = vector.shape_cast %37 : vector<64xf32> to vector<1x64xf32>
    %cst_19 = arith.constant 1.250000e-01 : f32
    %39 = vector.broadcast %cst_19 : f32 to vector<1x64xf32>
    %40 = arith.mulf %38, %39 : vector<1x64xf32>
    %41 = vector.extract_strided_slice %40 {offsets = [0, 0], sizes = [1, 32], strides = [1, 1]} : vector<1x64xf32> to vector<1x32xf32>
    %42 = vector.extract_strided_slice %40 {offsets = [0, 32], sizes = [1, 32], strides = [1, 1]} : vector<1x64xf32> to vector<1x32xf32>
    %43 = arith.mulf %41, %41 : vector<1x32xf32>
    %44 = arith.subf %42, %43 : vector<1x32xf32>
    %cst_20 = arith.constant 0.000000e+00 : f32
    %45 = vector.broadcast %cst_20 : f32 to vector<1x32xf32>
    %46 = arith.maximumf %44, %45 : vector<1x32xf32>
    %cst_21 = arith.constant 9.99999974E-6 : f32
    %47 = vector.broadcast %cst_21 : f32 to vector<1x32xf32>
    %48 = arith.addf %46, %47 : vector<1x32xf32>
    %49 = math.rsqrt %48 : vector<1x32xf32>
    %50 = arith.mulf %4, %49 : vector<1x32xf32>
    %51 = arith.mulf %41, %50 : vector<1x32xf32>
    %52 = arith.subf %5, %51 : vector<1x32xf32>
    %53 = vector.broadcast %50 : vector<1x32xf32> to vector<8x32xf32>
    %54 = arith.mulf %34, %53 : vector<8x32xf32>
    %55 = vector.broadcast %52 : vector<1x32xf32> to vector<8x32xf32>
    %56 = arith.addf %54, %55 : vector<8x32xf32>
    %cst_22 = arith.constant 0.000000e+00 : f32
    %57 = vector.broadcast %cst_22 : f32 to vector<8x32xf32>
    %58 = arith.maximumf %56, %57 : vector<8x32xf32>
    %c0_23 = arith.constant 0 : index
    %c0_24 = arith.constant 0 : index
    %59 = vector.load %arg3[%c0_23, %c0_24] : memref<32x128xf32, #tpu.memory_space<vmem>>, vector<32x128xf32>
    %cst_25 = arith.constant dense<0.000000e+00> : vector<8x128xf32>
    %60 = tpu.matmul %58, %59, %cst_25 {dimension_numbers = #tpu.dot_dimension_numbers<[1], [0], [0], [1], [0, 0, 1, 1], [], []>} : vector<8x32xf32>, vector<32x128xf32>, vector<8x128xf32> -> vector<8x128xf32>
    %61 = vector.broadcast %6 : vector<1x128xf32> to vector<8x128xf32>
    %62 = arith.addf %60, %61 : vector<8x128xf32>
    %c0_26 = arith.constant 0 : index
    %c0_27 = arith.constant 0 : index
    %c0_28 = arith.constant 0 : index
    %63 = vector.load %arg5[%c0_26, %c0_27, %c0_28] : memref<1x8x128xf32, #tpu.memory_space<vmem>>, vector<1x8x128xf32>
    %64 = vector.shape_cast %63 : vector<1x8x128xf32> to vector<8x128xf32>
    %65 = vector.shape_cast %62 : vector<8x128xf32> to vector<1x8x128xf32>
    tpu.vector_store %arg5[%c0_26, %c0_27, %c0_28], %65 {strides = array<i32>} : memref<1x8x128xf32, #tpu.memory_space<vmem>>, vector<1x8x128xf32>,
    return
  }
}

</mosaic_0001>

<llo_original>
// kernel: discriminator_forward.1
$region0: #{discriminator_forward.1}
  #allocation0 [shape = 'u32[]', space=smem, size = 0x4, offset = 0x4, fixed_abs, tag = 'smem constant byte address 0x4 - core index']
  #allocation1 [shape = 'u32[144,128]{1,0:T(1,128)}', space=vmem, size = 0x12000, scoped, tag = 'internal scratch']
  %s0 = inlined_call_operand.hbm [shape: f32[1,8,16], index: 0, kind: input, shape index: {}]
  %s1 = inlined_call_operand.hbm [shape: f32[16,32], index: 1, kind: input, shape index: {}]
  %s2 = inlined_call_operand.hbm [shape: f32[32,32], index: 2, kind: input, shape index: {}]
  %s3 = inlined_call_operand.hbm [shape: f32[32,128], index: 3, kind: input, shape index: {}]
  %s4 = inlined_call_operand.vmem [shape: f32[8,128], index: 4, kind: input, shape index: {}]
  %s5 = inlined_call_operand.vmem [shape: f32[1,8,128], index: 5, kind: output, shape index: {}]
  %s6 = sld [smem:[#allocation0]]
  $region46: #{discriminator_forward.1} parent=0
    _
  %s8 = ssub.s32 1, %s6
  %s9 = scalar_select 0, %s8, %s6
  $region1: #{discriminator_forward.1} parent=0
    #allocation2 [shape = 'u8[4096]{0}', space=vmem, size = 0x1000, scoped, tag = 'input window, operand 0, single buffered']
    #allocation3 [shape = 's32[1]{0}', space=sflag, size = 0x4, scoped, tag = 'scoped memory for discriminator_forward.1']
    #allocation4 [shape = 'u8[8192]{0}', space=vmem, size = 0x2000, scoped, tag = 'input window, operand 1, single buffered']
    #allocation5 [shape = 's32[1]{0}', space=sflag, size = 0x4, scoped, tag = 'scoped memory for discriminator_forward.1']
    #allocation6 [shape = 'u8[16384]{0}', space=vmem, size = 0x4000, scoped, tag = 'input window, operand 2, single buffered']
    #allocation7 [shape = 'u8[16384]{0}', space=vmem, size = 0x4000, scoped, tag = 'input window, operand 3, single buffered']
    #allocation8 [shape = 's32[1]{0}', space=sflag, size = 0x4, scoped, tag = 'scoped memory for discriminator_forward.1']
    %10 = vsyncpa [#allocation3], 0
    %11 = vsyncpa [#allocation5], 0
    %12 = vsyncpa [#allocation8], 0
    // Predicated region
    $region2: #{discriminator_forward.1} parent=1 // pred_check
      _
    $region3: #{discriminator_forward.1} parent=1 // pred_check_branch
      %14 = sbr.rel (0) target = $region5
    $region4: #{discriminator_forward.1} parent=1 // pred_region
      %s16 = ssub.s32 128, 128
      %17 = vsyncadd [#allocation3], %s16
      %s19 = sshll.u32 [#allocation2], 4
      %s20 = int_to_ptr.vmem [resolvable:$true] %s19
      %22 = dma.hbm_to_vmem [thread:$0]  %s0, 128, %s20, [#allocation3]
    $region5: #{discriminator_forward.1} parent=1 // pred_fallthru
      _
    // Predicated region
    $region6: #{discriminator_forward.1} parent=1 // pred_check
      _
    $region7: #{discriminator_forward.1} parent=1 // pred_check_branch
      %24 = sbr.rel (0) target = $region9
    $region8: #{discriminator_forward.1} parent=1 // pred_region
      %s26 = ssub.s32 256, 256
      %27 = vsyncadd [#allocation5], %s26
      %s28 = sshll.u32 [#allocation4], 4
      %s29 = int_to_ptr.vmem [resolvable:$true] %s28
      %34 = dma.hbm_to_vmem [thread:$0]  %s1, 256, %s29, [#allocation5], 128, 128, 8
    $region9: #{discriminator_forward.1} parent=1 // pred_fallthru
      _
    // Predicated region
    $region10: #{discriminator_forward.1} parent=1 // pred_check
      _
    $region11: #{discriminator_forward.1} parent=1 // pred_check_branch
      %36 = sbr.rel (0) target = $region13
    $region12: #{discriminator_forward.1} parent=1 // pred_region
      %s38 = ssub.s32 512, 512
      %39 = vsyncadd [#allocation5], %s38
      %s40 = sshll.u32 [#allocation6], 4
      %s41 = int_to_ptr.vmem [resolvable:$true] %s40
      %46 = dma.hbm_to_vmem [thread:$0]  %s2, 512, %s41, [#allocation5], 128, 128, 8
    $region13: #{discriminator_forward.1} parent=1 // pred_fallthru
      _
    // Predicated region
    $region14: #{discriminator_forward.1} parent=1 // pred_check
      _
    $region15: #{discriminator_forward.1} parent=1 // pred_check_branch
      %48 = sbr.rel (0) target = $region17
    $region16: #{discriminator_forward.1} parent=1 // pred_region
      %s50 = ssub.s32 512, 512
      %51 = vsyncadd [#allocation8], %s50
      %s52 = sshll.u32 [#allocation7], 4
      %s53 = int_to_ptr.vmem [resolvable:$true] %s52
      %58 = dma.hbm_to_vmem [thread:$0]  %s3, 512, %s53, [#allocation8], 128, 128, 8
    $region17: #{discriminator_forward.1} parent=1 // pred_fallthru
      _
    // Predicated region
    $region18: #{discriminator_forward.1} parent=1 // pred_check
      _
    $region19: #{discriminator_forward.1} parent=1 // pred_check_branch
      %60 = sbr.rel (0) target = $region21
    $region20: #{discriminator_forward.1} parent=1 // pred_region
      _
    $region21: #{discriminator_forward.1} parent=1 // pred_fallthru
      _
    // Predicated region
    $region22: #{discriminator_forward.1} parent=1 // pred_check
      _
    $region23: #{discriminator_forward.1} parent=1 // pred_check_branch
      %62 = sbr.rel (0) target = $region25
    $region24: #{discriminator_forward.1} parent=1 // pred_region
      %63 = dma.done [#allocation3], 128
    $region25: #{discriminator_forward.1} parent=1 // pred_fallthru
      _
    // Predicated region
    $region26: #{discriminator_forward.1} parent=1 // pred_check
      _
    $region27: #{discriminator_forward.1} parent=1 // pred_check_branch
      %65 = sbr.rel (0) target = $region29
    $region28: #{discriminator_forward.1} parent=1 // pred_region
      %66 = dma.done [#allocation5], 256
    $region29: #{discriminator_forward.1} parent=1 // pred_fallthru
      _
    // Predicated region
    $region30: #{discriminator_forward.1} parent=1 // pred_check
      _
    $region31: #{discriminator_forward.1} parent=1 // pred_check_branch
      %68 = sbr.rel (0) target = $region33
    $region32: #{discriminator_forward.1} parent=1 // pred_region
      %69 = dma.done [#allocation5], 512
    $region33: #{discriminator_forward.1} parent=1 // pred_fallthru
      _
    // Predicated region
    $region34: #{discriminator_forward.1} parent=1 // pred_check
      _
    $region35: #{discriminator_forward.1} parent=1 // pred_check_branch
      %71 = sbr.rel (0) target = $region37
    $region36: #{discriminator_forward.1} parent=1 // pred_region
      %72 = dma.done [#allocation8], 512
    $region37: #{discriminator_forward.1} parent=1 // pred_fallthru
      _
    %v73 = vld [vmem:[#allocation2] sm:$0xff]
    %v74 = vld [vmem:[%s4] sm:$0x1]
    %v75 = vld [vmem:[%s4 + $0x1] sm:$0x1]
    %v76 = vld [vmem:[%s4 + $0x2] sm:$0x1]
    %v77 = vld [vmem:[%s4 + $0x3] sm:$0x1]
    %v78 = vld [vmem:[%s4 + $0x4] sm:$0x1]
    %v79 = vld [vmem:[#allocation4] sm:$0xff]
    %v80 = vld [vmem:[#allocation4 + $0x8] sm:$0xff]
    %vm81 = vcmask 130048
    %v83 = vsel %vm81, %v73, 0
    %85 = vmatprep.subr.mxu0 0.0
    %86 = vmatpush1.msra.mxu0 %v79
    %87 = vmatprep.subr.mxu0 0.0
    %88 = vmatpush1.msra.mxu0 %v80
    %89 = vmatprep.subr.mxu0 0.0
    %90 = vmatpush1.msra.mxu0 0.0
    %91 = vmatprep.subr.mxu0 0.0
    %92 = vmatpush1.msra.mxu0 0.0
    %93 = vmatprep.subr.mxu0 0.0
    %94 = vmatpush1.msra.mxu0 0.0
    %95 = vmatprep.subr.mxu0 0.0
    %96 = vmatpush1.msra.mxu0 0.0
    %97 = vmatprep.subr.mxu0 0.0
    %98 = vmatpush1.msra.mxu0 0.0
    %99 = vmatprep.subr.mxu0 0.0
    %100 = vmatpush1.msra.mxu0 0.0
    %101 = vmatprep.subr.mxu0 0.0
    %102 = vmatpush1.msra.mxu0 0.0
    %103 = vmatprep.subr.mxu0 0.0
    %104 = vmatpush1.msra.mxu0 0.0
    %105 = vmatprep.subr.mxu0 0.0
    %106 = vmatpush1.msra.mxu0 0.0
    %107 = vmatprep.subr.mxu0 0.0
    %108 = vmatpush1.msra.mxu0 0.0
    %109 = vmatprep.subr.mxu0 0.0
    %110 = vmatpush1.msra.mxu0 0.0
    %111 = vmatprep.subr.mxu0 0.0
    %112 = vmatpush1.msra.mxu0 0.0
    %113 = vmatprep.subr.mxu0 0.0
    %114 = vmatpush1.msra.mxu0 0.0
    %115 = vmatprep.subr.mxu0 0.0
    %116 = vmatpush1.msra.mxu0 0.0
    %117 = vmatprep.subr.mxu0 0.0
    %118 = vmatpush1.msra.mxu0 0.0
    %119 = vmatprep.subr.mxu0 0.0
    %120 = vmatpush1.msra.mxu0 0.0
    %121 = vmatprep.subr.mxu0 0.0
    %122 = vmatpush1.msra.mxu0 0.0
    %123 = vmatprep.subr.mxu0 0.0
    %124 = vmatpush1.msra.mxu0 0.0
    %125 = vmatprep.subr.mxu0 0.0
    %126 = vmatpush1.msra.mxu0 0.0
    %127 = vmatprep.subr.mxu0 0.0
    %128 = vmatpush1.msra.mxu0 0.0
    %129 = vmatprep.subr.mxu0 0.0
    %130 = vmatpush1.msra.mxu0 0.0
    %131 = vmatprep.subr.mxu0 0.0
    %132 = vmatpush1.msra.mxu0 0.0
    %133 = vmatprep.subr.mxu0 0.0
    %134 = vmatpush1.msra.mxu0 0.0
    %135 = vmatprep.subr.mxu0 0.0
    %136 = vmatpush1.msra.mxu0 0.0
    %137 = vmatprep.subr.mxu0 0.0
    %138 = vmatpush1.msra.mxu0 0.0
    %139 = vmatprep.subr.mxu0 0.0
    %140 = vmatpush1.msra.mxu0 0.0
    %141 = vmatprep.subr.mxu0 0.0
    %142 = vmatpush1.msra.mxu0 0.0
    %143 = vmatprep.subr.mxu0 0.0
    %144 = vmatpush1.msra.mxu0 0.0
    %145 = vmatprep.subr.mxu0 0.0
    %146 = vmatpush1.msra.mxu0 0.0
    %147 = vmatprep.subr.mxu0 0.0
    %148 = vmatpush1.msra.mxu0 0.0
    %149 = vmatprep.mubr.f32.mxu0 0.0
    %150 = vmatmul.mubr.f32.gmra.mrb[0].mxu0 %v83
    %v151 = vpop.f32.mrb[0].mxu0
    %v152 = vadd.f32 0.0, %v151
    %v153 = vpop.f32.mrb[0].mxu0
    %154 = vdwg.mxu0
    %v155 = vmul.f32 %v152, %v152
    %157 = vrot.lane.b32.xlu0 %v155, 32
    %v158 = vpop.permute.xlu0 %157
    %vm160 = vcmask 261120
    %v161 = vsel %vm160, %v152, %v158
    %vm162 = vcmask 523264
    %v163 = vsel %vm162, %v161, 0.0
    %v164 = vrot.slane %v163, 4
    %v165 = vadd.f32 %v163, %v164
    %v166 = vrot.slane %v165, 2
    %v167 = vadd.f32 %v165, %v166
    %v168 = vrot.slane %v167, 1
    %v169 = vadd.f32 %v167, %v168
    %v170 = vmul.f32 %v169, 0.125
    %v171 = vmul.f32 %v170, %v170
    %173 = vrot.lane.b32.xlu0 %v171, 32
    %v174 = vpop.permute.xlu0 %173
    %v176 = vsub.f32 %v170, %v174
    %v177 = vmax.f32 %v176, 0.0
    %v178 = vadd.f32 %v177, 1e-05
    %v179 = vrsqrt.pop %v178
    %181 = vrot.lane.b32.xlu0 %v179, 96
    %v182 = vpop.permute.xlu0 %181
    %v184 = vmul.f32 %v74, %v182
    %v185 = vmul.f32 %v170, %v184
    %v186 = vsub.f32 %v75, %v185
    %v187 = vlaneseq
    %v188 = vshrl.u32 %v187, 7
    %v189 = vsub.s32 0, %v188
    %v190 = vrot.slane %v184, %v189
    %v191 = vmul.f32 %v152, %v190
    %v192 = vlaneseq
    %v193 = vshrl.u32 %v192, 7
    %v194 = vsub.s32 0, %v193
    %v195 = vrot.slane %v186, %v194
    %v196 = vadd.f32 %v191, %v195
    %v197 = vmax.f32 %v196, 0.0
    %v198 = vld [vmem:[#allocation6] sm:$0xff]
    %v199 = vld [vmem:[#allocation6 + $0x8] sm:$0xff]
    %v200 = vld [vmem:[#allocation6 + $0x10] sm:$0xff]
    %v201 = vld [vmem:[#allocation6 + $0x18] sm:$0xff]
    %v203 = vsel %vm160, %v197, 0
    %205 = vmatprep.subr.mxu0 0.0
    %206 = vmatpush1.msra.mxu0 %v198
    %207 = vmatprep.subr.mxu0 0.0
    %208 = vmatpush1.msra.mxu0 %v199
    %209 = vmatprep.subr.mxu0 0.0
    %210 = vmatpush1.msra.mxu0 %v200
    %211 = vmatprep.subr.mxu0 0.0
    %212 = vmatpush1.msra.mxu0 %v201
    %213 = vmatprep.subr.mxu0 0.0
    %214 = vmatpush1.msra.mxu0 0.0
    %215 = vmatprep.subr.mxu0 0.0
    %216 = vmatpush1.msra.mxu0 0.0
    %217 = vmatprep.subr.mxu0 0.0
    %218 = vmatpush1.msra.mxu0 0.0
    %219 = vmatprep.subr.mxu0 0.0
    %220 = vmatpush1.msra.mxu0 0.0
    %221 = vmatprep.subr.mxu0 0.0
    %222 = vmatpush1.msra.mxu0 0.0
    %223 = vmatprep.subr.mxu0 0.0
    %224 = vmatpush1.msra.mxu0 0.0
    %225 = vmatprep.subr.mxu0 0.0
    %226 = vmatpush1.msra.mxu0 0.0
    %227 = vmatprep.subr.mxu0 0.0
    %228 = vmatpush1.msra.mxu0 0.0
    %229 = vmatprep.subr.mxu0 0.0
    %230 = vmatpush1.msra.mxu0 0.0
    %231 = vmatprep.subr.mxu0 0.0
    %232 = vmatpush1.msra.mxu0 0.0
    %233 = vmatprep.subr.mxu0 0.0
    %234 = vmatpush1.msra.mxu0 0.0
    %235 = vmatprep.subr.mxu0 0.0
    %236 = vmatpush1.msra.mxu0 0.0
    %237 = vmatprep.subr.mxu0 0.0
    %238 = vmatpush1.msra.mxu0 0.0
    %239 = vmatprep.subr.mxu0 0.0
    %240 = vmatpush1.msra.mxu0 0.0
    %241 = vmatprep.subr.mxu0 0.0
    %242 = vmatpush1.msra.mxu0 0.0
    %243 = vmatprep.subr.mxu0 0.0
    %244 = vmatpush1.msra.mxu0 0.0
    %245 = vmatprep.subr.mxu0 0.0
    %246 = vmatpush1.msra.mxu0 0.0
    %247 = vmatprep.subr.mxu0 0.0
    %248 = vmatpush1.msra.mxu0 0.0
    %249 = vmatprep.subr.mxu0 0.0
    %250 = vmatpush1.msra.mxu0 0.0
    %251 = vmatprep.subr.mxu0 0.0
    %252 = vmatpush1.msra.mxu0 0.0
    %253 = vmatprep.subr.mxu0 0.0
    %254 = vmatpush1.msra.mxu0 0.0
    %255 = vmatprep.subr.mxu0 0.0
    %256 = vmatpush1.msra.mxu0 0.0
    %257 = vmatprep.subr.mxu0 0.0
    %258 = vmatpush1.msra.mxu0 0.0
    %259 = vmatprep.subr.mxu0 0.0
    %260 = vmatpush1.msra.mxu0 0.0
    %261 = vmatprep.subr.mxu0 0.0
    %262 = vmatpush1.msra.mxu0 0.0
    %263 = vmatprep.subr.mxu0 0.0
    %264 = vmatpush1.msra.mxu0 0.0
    %265 = vmatprep.subr.mxu0 0.0
    %266 = vmatpush1.msra.mxu0 0.0
    %267 = vmatprep.subr.mxu0 0.0
    %268 = vmatpush1.msra.mxu0 0.0
    %269 = vmatprep.mubr.f32.mxu0 0.0
    %270 = vmatmul.mubr.f32.gmra.mrb[0].mxu0 %v203
    %v271 = vpop.f32.mrb[0].mxu0
    %v272 = vadd.f32 0.0, %v271
    %v273 = vpop.f32.mrb[0].mxu0
    %274 = vdwg.mxu0
    %v275 = vmul.f32 %v272, %v272
    %277 = vrot.lane.b32.xlu0 %v275, 32
    %v278 = vpop.permute.xlu0 %277
    %v280 = vsel %vm160, %v272, %v278
    %v281 = vsel %vm162, %v280, 0.0
    %v282 = vrot.slane %v281, 4
    %v283 = vadd.f32 %v281, %v282
    %v284 = vrot.slane %v283, 2
    %v285 = vadd.f32 %v283, %v284
    %v286 = vrot.slane %v285, 1
    %v287 = vadd.f32 %v285, %v286
    %v288 = vmul.f32 %v287, 0.125
    %v289 = vmul.f32 %v288, %v288
    %291 = vrot.lane.b32.xlu0 %v289, 32
    %v292 = vpop.permute.xlu0 %291
    %v294 = vsub.f32 %v288, %v292
    %v295 = vmax.f32 %v294, 0.0
    %v296 = vadd.f32 %v295, 1e-05
    %v297 = vrsqrt.pop %v296
    %299 = vrot.lane.b32.xlu0 %v297, 96
    %v300 = vpop.permute.xlu0 %299
    %v302 = vmul.f32 %v76, %v300
    %v303 = vmul.f32 %v288, %v302
    %v304 = vsub.f32 %v77, %v303
    %v305 = vlaneseq
    %v306 = vshrl.u32 %v305, 7
    %v307 = vsub.s32 0, %v306
    %v308 = vrot.slane %v302, %v307
    %v309 = vmul.f32 %v272, %v308
    %v310 = vlaneseq
    %v311 = vshrl.u32 %v310, 7
    %v312 = vsub.s32 0, %v311
    %v313 = vrot.slane %v304, %v312
    %v314 = vadd.f32 %v309, %v313
    %v315 = vmax.f32 %v314, 0.0
    %v316 = vld [vmem:[#allocation7] sm:$0xff]
    %v317 = vld [vmem:[#allocation7 + $0x8] sm:$0xff]
    %v318 = vld [vmem:[#allocation7 + $0x10] sm:$0xff]
    %v319 = vld [vmem:[#allocation7 + $0x18] sm:$0xff]
    %v320 = vlaneseq
    %v321 = vshrl.u32 %v320, 7
    %v322 = vsub.s32 0, %v321
    %v323 = vrot.slane %v78, %v322
    %v325 = vsel %vm160, %v315, 0
    %327 = vmatprep.subr.mxu0 0.0
    %328 = vmatpush1.msra.mxu0 %v316
    %329 = vmatprep.subr.mxu0 0.0
    %330 = vmatpush1.msra.mxu0 %v317
    %331 = vmatprep.subr.mxu0 0.0
    %332 = vmatpush1.msra.mxu0 %v318
    %333 = vmatprep.subr.mxu0 0.0
    %334 = vmatpush1.msra.mxu0 %v319
    %335 = vmatprep.subr.mxu0 0.0
    %336 = vmatpush1.msra.mxu0 0.0
    %337 = vmatprep.subr.mxu0 0.0
    %338 = vmatpush1.msra.mxu0 0.0
    %339 = vmatprep.subr.mxu0 0.0
    %340 = vmatpush1.msra.mxu0 0.0
    %341 = vmatprep.subr.mxu0 0.0
    %342 = vmatpush1.msra.mxu0 0.0
    %343 = vmatprep.subr.mxu0 0.0
    %344 = vmatpush1.msra.mxu0 0.0
    %345 = vmatprep.subr.mxu0 0.0
    %346 = vmatpush1.msra.mxu0 0.0
    %347 = vmatprep.subr.mxu0 0.0
    %348 = vmatpush1.msra.mxu0 0.0
    %349 = vmatprep.subr.mxu0 0.0
    %350 = vmatpush1.msra.mxu0 0.0
    %351 = vmatprep.subr.mxu0 0.0
    %352 = vmatpush1.msra.mxu0 0.0
    %353 = vmatprep.subr.mxu0 0.0
    %354 = vmatpush1.msra.mxu0 0.0
    %355 = vmatprep.subr.mxu0 0.0
    %356 = vmatpush1.msra.mxu0 0.0
    %357 = vmatprep.subr.mxu0 0.0
    %358 = vmatpush1.msra.mxu0 0.0
    %359 = vmatprep.subr.mxu0 0.0
    %360 = vmatpush1.msra.mxu0 0.0
    %361 = vmatprep.subr.mxu0 0.0
    %362 = vmatpush1.msra.mxu0 0.0
    %363 = vmatprep.subr.mxu0 0.0
    %364 = vmatpush1.msra.mxu0 0.0
    %365 = vmatprep.subr.mxu0 0.0
    %366 = vmatpush1.msra.mxu0 0.0
    %367 = vmatprep.subr.mxu0 0.0
    %368 = vmatpush1.msra.mxu0 0.0
    %369 = vmatprep.subr.mxu0 0.0
    %370 = vmatpush1.msra.mxu0 0.0
    %371 = vmatprep.subr.mxu0 0.0
    %372 = vmatpush1.msra.mxu0 0.0
    %373 = vmatprep.subr.mxu0 0.0
    %374 = vmatpush1.msra.mxu0 0.0
    %375 = vmatprep.subr.mxu0 0.0
    %376 = vmatpush1.msra.mxu0 0.0
    %377 = vmatprep.subr.mxu0 0.0
    %378 = vmatpush1.msra.mxu0 0.0
    %379 = vmatprep.subr.mxu0 0.0
    %380 = vmatpush1.msra.mxu0 0.0
    %381 = vmatprep.subr.mxu0 0.0
    %382 = vmatpush1.msra.mxu0 0.0
    %383 = vmatprep.subr.mxu0 0.0
    %384 = vmatpush1.msra.mxu0 0.0
    %385 = vmatprep.subr.mxu0 0.0
    %386 = vmatpush1.msra.mxu0 0.0
    %387 = vmatprep.subr.mxu0 0.0
    %388 = vmatpush1.msra.mxu0 0.0
    %389 = vmatprep.subr.mxu0 0.0
    %390 = vmatpush1.msra.mxu0 0.0
    %391 = vmatprep.mubr.f32.mxu0 0.0
    %392 = vmatmul.mubr.f32.gmra.mrb[0].mxu0 %v325
    %v393 = vpop.f32.mrb[0].mxu0
    %v394 = vadd.f32 %v323, %v393
    %v395 = vpop.f32.mrb[0].mxu0
    %396 = vdwg.mxu0
    %397 = vst [vmem:[%s5] sm:$0xff] %v394
    // Predicated region
    $region38: #{discriminator_forward.1} parent=1 // pred_check
      _
    $region39: #{discriminator_forward.1} parent=1 // pred_check_branch
      %399 = sbr.rel (0) target = $region41
    $region40: #{discriminator_forward.1} parent=1 // pred_region
      _
    $region41: #{discriminator_forward.1} parent=1 // pred_fallthru
      _
    // Predicated region
    $region42: #{discriminator_forward.1} parent=1 // pred_check
      _
    $region43: #{discriminator_forward.1} parent=1 // pred_check_branch
      %401 = sbr.rel (0) target = $region45
    $region44: #{discriminator_forward.1} parent=1 // pred_region
      _
    $region45: #{discriminator_forward.1} parent=1 // pred_fallthru
      _
    %402 = vsyncpa [#allocation3], 1
    %403 = vsyncpa [#allocation5], 1
    %404 = vsyncpa [#allocation8], 1

</llo_original>
